<compile_context>
chip_gen: v7x
topology: tpu7x:2x2x1
jax: 0.10.0
libtpu: 0.0.40
codegen_flags: <defaults>
</compile_context>

<pallas_src>
import functools

import jax
import jax.numpy as jnp
from jax import lax
from jax.experimental import pallas as pl
from jax.experimental.pallas import tpu as pltpu

LN_EPS = 1e-5          # nn.LayerNorm default eps
LEAKY_SLOPE = 0.2      # nn.LeakyReLU(0.2)


def _round_up(a, m):
    return ((a + m - 1) // m) * m


def _fcblock_ln_kernel(x_ref, w_ref, p_ref, o_ref, acc_ref, *, out_dim, mask_cols):
    k = pl.program_id(1)

    @pl.when(k == 0)
    def _():
        acc_ref[...] = jnp.zeros_like(acc_ref)

    # MXU matmul: bf16 x bf16 -> f32 accumulator.
    acc_ref[...] += jnp.dot(x_ref[...], w_ref[...],
                            preferred_element_type=jnp.float32)

    @pl.when(k == pl.num_programs(1) - 1)
    def _():
        y = acc_ref[...] + p_ref[0:1, :]                       # + bias
        if mask_cols:
            # out_dim was padded to a multiple of 128; LN stats over valid cols.
            col = lax.broadcasted_iota(jnp.int32, y.shape, 1)
            valid = col < out_dim
            inv_n = 1.0 / out_dim
            mean = jnp.sum(jnp.where(valid, y, 0.0), axis=-1, keepdims=True) * inv_n
            centered = y - mean
            var = jnp.sum(jnp.where(valid, centered * centered, 0.0),
                          axis=-1, keepdims=True) * inv_n
        else:
            mean = jnp.mean(y, axis=-1, keepdims=True)
            centered = y - mean
            var = jnp.mean(centered * centered, axis=-1, keepdims=True)
        y_norm = centered * lax.rsqrt(var + LN_EPS)
        y_norm = y_norm * p_ref[1:2, :] + p_ref[2:3, :]        # * gamma + beta
        out = jnp.where(y_norm >= 0, y_norm, LEAKY_SLOPE * y_norm)
        o_ref[...] = out.astype(o_ref.dtype)


def fcblock_ln(x, w_t, b, gamma, beta, *, tile_m=256, tk_max=512,
               compute_dtype=jnp.bfloat16):
    """FCBlock_LN forward.

    x: [..., in_dim]  (leading dims flattened like nn.Linear)
    w_t: [in_dim, out_dim]  (transposed nn.Linear weight)
    b, gamma, beta: [out_dim]
    """
    orig_lead = x.shape[:-1]
    in_dim = x.shape[-1]
    out_dim = w_t.shape[1]
    x2 = x.reshape(-1, in_dim)
    N = x2.shape[0]

    # ---- tiling choices --------------------------------------------------
    tm = min(tile_m, _round_up(max(N, 1), 8))        # row tile, multiple of 8
    if in_dim <= tk_max:
        tk, in_p = in_dim, in_dim                    # single K step, no K pad
    else:
        tk = tk_max                                  # multiple of 128
        in_p = _round_up(in_dim, tk)
    out_p = _round_up(out_dim, 128)                  # lane-dense output stores
    n_p = _round_up(N, tm)

    # ---- pad + pack operands (zeros are inert for the matmul) ------------
    xp = jnp.zeros((n_p, in_p), dtype=compute_dtype)
    xp = xp.at[:N, :in_dim].set(x2.astype(compute_dtype))
    wp = jnp.zeros((in_p, out_p), dtype=compute_dtype)
    wp = wp.at[:in_dim, :out_dim].set(w_t.astype(compute_dtype))
    params = jnp.zeros((3, out_p), dtype=jnp.float32)
    params = params.at[0, :out_dim].set(b.astype(jnp.float32))
    params = params.at[1, :out_dim].set(gamma.astype(jnp.float32))
    params = params.at[2, :out_dim].set(beta.astype(jnp.float32))

    grid = (n_p // tm, in_p // tk)   # reduction (K) axis last

    # VMEM budget: double-buffered x / W / params / out tiles + f32 acc.
    cbytes = jnp.dtype(compute_dtype).itemsize
    obytes = jnp.dtype(x.dtype).itemsize
    est = (2 * tm * tk * cbytes            # x tiles
           + 2 * tk * out_p * cbytes       # W tiles
           + 2 * 3 * out_p * 4             # packed params
           + 2 * tm * out_p * obytes       # out tiles
           + tm * out_p * 4)               # accumulator
    vmem_limit = int(min(max(2 * est, 32 * 1024 * 1024), 64 * 1024 * 1024))

    kernel = functools.partial(_fcblock_ln_kernel, out_dim=out_dim,
                               mask_cols=(out_p != out_dim))

    out_padded = pl.pallas_call(
        kernel,
        out_shape=jax.ShapeDtypeStruct((n_p, out_p), x.dtype),
        grid=grid,
        in_specs=[
            pl.BlockSpec((tm, tk), lambda i, k: (i, k)),       # x row/K tile
            pl.BlockSpec((tk, out_p), lambda i, k: (k, 0)),    # W^T K tile
            pl.BlockSpec((3, out_p), lambda i, k: (0, 0)),     # packed b/gamma/beta
        ],
        out_specs=pl.BlockSpec((tm, out_p), lambda i, k: (i, 0)),
        scratch_shapes=[pltpu.VMEM((tm, out_p), jnp.float32)],
        compiler_params=pltpu.CompilerParams(
            dimension_semantics=("parallel", "arbitrary"),
            vmem_limit_bytes=vmem_limit,
        ),
    )(xp, wp, params)

    return out_padded[:N, :out_dim].reshape(*orig_lead, out_dim)


# ---------------------------- references ----------------------------------
def _ln_leaky(y, gamma, beta):
    mean = jnp.mean(y, axis=-1, keepdims=True)
    var = jnp.mean((y - mean) ** 2, axis=-1, keepdims=True)
    y = (y - mean) / jnp.sqrt(var + LN_EPS)
    y = y * gamma + beta
    return jnp.where(y >= 0, y, LEAKY_SLOPE * y)


def reference_f32(x, w_t, b, gamma, beta):
    return _ln_leaky(x @ w_t + b, gamma, beta)


def reference_bf16_matmul(x, w_t, b, gamma, beta):
    y = jnp.dot(x.astype(jnp.bfloat16), w_t.astype(jnp.bfloat16),
                preferred_element_type=jnp.float32) + b
    return _ln_leaky(y, gamma, beta)


if __name__ == "__main__":
    # Small shapes consistent with the module: leading (batch, seq) flattened
    # by nn.Linear, in_dim=32, out_dim=64 (padded to 128 lanes inside).
    batch, seq, in_dim, out_dim = 2, 8, 32, 64
    key = jax.random.PRNGKey(0)
    kx, kw, kb = jax.random.split(key, 3)

    x = jax.random.normal(kx, (batch, seq, in_dim), dtype=jnp.float32)
    # nn.Linear weight is (out_dim, in_dim); kernel takes it transposed.
    w = jax.random.normal(kw, (out_dim, in_dim), dtype=jnp.float32) / jnp.sqrt(in_dim)
    b = jax.random.normal(kb, (out_dim,), dtype=jnp.float32) * 0.01
    gamma = jnp.ones((out_dim,), dtype=jnp.float32)   # nn.LayerNorm default weight
    beta = jnp.zeros((out_dim,), dtype=jnp.float32)   # nn.LayerNorm default bias
    w_t = w.T                                         # [in_dim, out_dim]

    out = fcblock_ln(x, w_t, b, gamma, beta)
    out = jax.block_until_ready(out)
    assert out.shape == (batch, seq, out_dim)

    # Tight check vs a reference using the same bf16 MXU inputs.
    ref_b = reference_bf16_matmul(x, w_t, b, gamma, beta)
    assert jnp.allclose(out, ref_b, atol=2e-3, rtol=2e-3), "mismatch vs bf16 reference"

    # Sanity check vs pure-f32 PyTorch semantics (bf16 MXU inputs loosen tol).
    ref_f = reference_f32(x, w_t, b, gamma, beta)
    assert jnp.allclose(out, ref_f, atol=5e-2, rtol=5e-2), "mismatch vs f32 reference"

    print("KERNEL_OK")
</pallas_src>

<mosaic_0001>
module attributes {stable_mosaic.version = 11 : i64} {
  func.func @_fcblock_ln_kernel(%arg0: i32, %arg1: i32, %arg2: memref<16x32xbf16, #tpu.memory_space<vmem>>, %arg3: memref<32x128xbf16, #tpu.memory_space<vmem>>, %arg4: memref<3x128xf32, #tpu.memory_space<vmem>>, %arg5: memref<16x128xf32, #tpu.memory_space<vmem>>, %arg6: memref<16x128xf32, #tpu.memory_space<vmem>>) attributes {dimension_semantics = [#tpu.dimension_semantics<parallel>, #tpu.dimension_semantics<arbitrary>], iteration_bounds = array<i64: 1, 1>, scalar_prefetch = 0 : i64, scratch_operands = 1 : i64, tpu.core_type = #tpu.core_type<tc>, window_params = [{transform_indices = @transform_0, window_bounds = array<i64: 16, 32>}, {transform_indices = @transform_1, window_bounds = array<i64: 32, 128>}, {pipeline_mode = #tpu.pipeline_mode<synchronous>, transform_indices = @transform_2, window_bounds = array<i64: 3, 128>}, {transform_indices = @transform_3, window_bounds = array<i64: 16, 128>}]} {
    %c0_i32 = arith.constant 0 : i32
    %0 = arith.cmpi eq, %arg1, %c0_i32 : i32
    %1 = arith.extui %0 : i1 to i32
    %c0_i32_0 = arith.constant 0 : i32
    %2 = arith.cmpi ne, %1, %c0_i32_0 : i32
    scf.if %2 {
      %cst_10 = arith.constant 0.000000e+00 : f32
      %12 = vector.broadcast %cst_10 : f32 to vector<16x128xf32>
      %c0_11 = arith.constant 0 : index
      %c0_12 = arith.constant 0 : index
      %13 = vector.load %arg6[%c0_11, %c0_12] : memref<16x128xf32, #tpu.memory_space<vmem>>, vector<16x128xf32>
      tpu.vector_store %arg6[%c0_11, %c0_12], %12 {strides = array<i32>} : memref<16x128xf32, #tpu.memory_space<vmem>>, vector<16x128xf32>,
    } else {
    }
    %c0 = arith.constant 0 : index
    %c0_1 = arith.constant 0 : index
    %3 = vector.load %arg6[%c0, %c0_1] : memref<16x128xf32, #tpu.memory_space<vmem>>, vector<16x128xf32>
    %c0_2 = arith.constant 0 : index
    %c0_3 = arith.constant 0 : index
    %4 = vector.load %arg2[%c0_2, %c0_3] : memref<16x32xbf16, #tpu.memory_space<vmem>>, vector<16x32xbf16>
    %c0_4 = arith.constant 0 : index
    %c0_5 = arith.constant 0 : index
    %5 = vector.load %arg3[%c0_4, %c0_5] : memref<32x128xbf16, #tpu.memory_space<vmem>>, vector<32x128xbf16>
    %cst = arith.constant dense<0.000000e+00> : vector<16x128xf32>
    %6 = tpu.matmul %4, %5, %cst {dimension_numbers = #tpu.dot_dimension_numbers<[1], [0], [0], [1], [0, 0, 1, 1], [], []>} : vector<16x32xbf16>, vector<32x128xbf16>, vector<16x128xf32> -> vector<16x128xf32>
    %7 = arith.addf %3, %6 : vector<16x128xf32>
    %c0_6 = arith.constant 0 : index
    %c0_7 = arith.constant 0 : index
    %8 = vector.load %arg6[%c0_6, %c0_7] : memref<16x128xf32, #tpu.memory_space<vmem>>, vector<16x128xf32>
    tpu.vector_store %arg6[%c0_6, %c0_7], %7 {strides = array<i32>} : memref<16x128xf32, #tpu.memory_space<vmem>>, vector<16x128xf32>,
    %c0_i32_8 = arith.constant 0 : i32
    %9 = arith.cmpi eq, %arg1, %c0_i32_8 : i32
    %10 = arith.extui %9 : i1 to i32
    %c0_i32_9 = arith.constant 0 : i32
    %11 = arith.cmpi ne, %10, %c0_i32_9 : i32
    scf.if %11 {
      %c0_10 = arith.constant 0 : index
      %c0_11 = arith.constant 0 : index
      %12 = vector.load %arg6[%c0_10, %c0_11] : memref<16x128xf32, #tpu.memory_space<vmem>>, vector<16x128xf32>
      %c0_12 = arith.constant 0 : index
      %c0_13 = arith.constant 0 : index
      %13 = vector.load %arg4[%c0_12, %c0_13] : memref<3x128xf32, #tpu.memory_space<vmem>>, vector<1x128xf32>
      %14 = vector.broadcast %13 : vector<1x128xf32> to vector<16x128xf32>
      %15 = arith.addf %12, %14 : vector<16x128xf32>
      %16 = tpu.iota {dimensions = array<i32: 1>} : vector<16x128xi32>
      %c64_i32 = arith.constant 64 : i32
      %17 = vector.broadcast %c64_i32 : i32 to vector<16x128xi32>
      %18 = arith.cmpi slt, %16, %17 : vector<16x128xi32>
      %cst_14 = arith.constant 0.000000e+00 : f32
      %19 = vector.broadcast %cst_14 : f32 to vector<16x128xf32>
      %20 = arith.select %18, %15, %19 : vector<16x128xi1>, vector<16x128xf32>
      %cst_15 = arith.constant dense<0.000000e+00> : vector<16xf32>
      %21 = vector.multi_reduction <add>, %20, %cst_15 [1] : vector<16x128xf32> to vector<16xf32>
      %22 = vector.shape_cast %21 : vector<16xf32> to vector<16x1xf32>
      %cst_16 = arith.constant 1.562500e-02 : f32
      %23 = vector.broadcast %cst_16 : f32 to vector<16x1xf32>
      %24 = arith.mulf %22, %23 : vector<16x1xf32>
      %25 = vector.broadcast %24 : vector<16x1xf32> to vector<16x128xf32>
      %26 = arith.subf %15, %25 : vector<16x128xf32>
      %27 = arith.mulf %26, %26 : vector<16x128xf32>
      %cst_17 = arith.constant 0.000000e+00 : f32
      %28 = vector.broadcast %cst_17 : f32 to vector<16x128xf32>
      %29 = arith.select %18, %27, %28 : vector<16x128xi1>, vector<16x128xf32>
      %cst_18 = arith.constant dense<0.000000e+00> : vector<16xf32>
      %30 = vector.multi_reduction <add>, %29, %cst_18 [1] : vector<16x128xf32> to vector<16xf32>
      %31 = vector.shape_cast %30 : vector<16xf32> to vector<16x1xf32>
      %cst_19 = arith.constant 1.562500e-02 : f32
      %32 = vector.broadcast %cst_19 : f32 to vector<16x1xf32>
      %33 = arith.mulf %31, %32 : vector<16x1xf32>
      %cst_20 = arith.constant 9.99999974E-6 : f32
      %34 = vector.broadcast %cst_20 : f32 to vector<16x1xf32>
      %35 = arith.addf %33, %34 : vector<16x1xf32>
      %36 = math.rsqrt %35 : vector<16x1xf32>
      %37 = vector.broadcast %36 : vector<16x1xf32> to vector<16x128xf32>
      %38 = arith.mulf %26, %37 : vector<16x128xf32>
      %c1 = arith.constant 1 : index
      %c0_21 = arith.constant 0 : index
      %39 = vector.load %arg4[%c1, %c0_21] : memref<3x128xf32, #tpu.memory_space<vmem>>, vector<1x128xf32>
      %40 = vector.broadcast %39 : vector<1x128xf32> to vector<16x128xf32>
      %41 = arith.mulf %38, %40 : vector<16x128xf32>
      %c2 = arith.constant 2 : index
      %c0_22 = arith.constant 0 : index
      %42 = vector.load %arg4[%c2, %c0_22] : memref<3x128xf32, #tpu.memory_space<vmem>>, vector<1x128xf32>
      %43 = vector.broadcast %42 : vector<1x128xf32> to vector<16x128xf32>
      %44 = arith.addf %41, %43 : vector<16x128xf32>
      %cst_23 = arith.constant 0.000000e+00 : f32
      %45 = vector.broadcast %cst_23 : f32 to vector<16x128xf32>
      %46 = arith.cmpf oge, %44, %45 : vector<16x128xf32>
      %cst_24 = arith.constant 2.000000e-01 : f32
      %47 = vector.broadcast %cst_24 : f32 to vector<16x128xf32>
      %48 = arith.mulf %47, %44 : vector<16x128xf32>
      %49 = arith.select %46, %44, %48 : vector<16x128xi1>, vector<16x128xf32>
      %c0_25 = arith.constant 0 : index
      %c0_26 = arith.constant 0 : index
      %50 = vector.load %arg5[%c0_25, %c0_26] : memref<16x128xf32, #tpu.memory_space<vmem>>, vector<16x128xf32>
      tpu.vector_store %arg5[%c0_25, %c0_26], %49 {strides = array<i32>} : memref<16x128xf32, #tpu.memory_space<vmem>>, vector<16x128xf32>,
    } else {
    }
    return
  }
  func.func @transform_0(%arg0: i32, %arg1: i32) -> (i32, i32) {
    %c0_i32 = arith.constant 0 : i32
    return %arg0, %arg1 : i32, i32
  }
  func.func @transform_1(%arg0: i32, %arg1: i32) -> (i32, i32) {
    %c0_i32 = arith.constant 0 : i32
    %c0_i32_0 = arith.constant 0 : i32
    return %arg1, %c0_i32 : i32, i32
  }
  func.func @transform_2(%arg0: i32, %arg1: i32) -> (i32, i32) {
    %c0_i32 = arith.constant 0 : i32
    %c0_i32_0 = arith.constant 0 : i32
    %c0_i32_1 = arith.constant 0 : i32
    return %c0_i32, %c0_i32_0 : i32, i32
  }
  func.func @transform_3(%arg0: i32, %arg1: i32) -> (i32, i32) {
    %c0_i32 = arith.constant 0 : i32
    %c0_i32_0 = arith.constant 0 : i32
    return %arg0, %c0_i32 : i32, i32
  }
}

</mosaic_0001>

<llo_original>
// kernel: tpu_custom_call.1
$region0: #{tpu_custom_call.1}
  #allocation0 [shape = 'u32[]', space=smem, size = 0x4, offset = 0x4, fixed_abs, tag = 'smem constant byte address 0x4 - core index']
  #allocation1 [shape = 'u32[144,128]{1,0:T(1,128)}', space=vmem, size = 0x12000, scoped, tag = 'internal scratch']
  #allocation2 [shape = 'f32[16,128]{1,0:T(8,128)}', space=vmem, size = 0x2000, scoped, tag = 'scratch operand']
  %s0 = inlined_call_operand.hbm [shape: bf16[16,32], index: 0, kind: input, shape index: {}]
  %s1 = inlined_call_operand.hbm [shape: bf16[32,128], index: 1, kind: input, shape index: {}]
  %s2 = inlined_call_operand.vmem [shape: f32[3,128], index: 2, kind: input, shape index: {}]
  %s3 = inlined_call_operand.hbm [shape: f32[16,128], index: 3, kind: output, shape index: {}]
  %s4 = sld [smem:[#allocation0]]
  $region38: #{tpu_custom_call.1} parent=0
    _
  %s6 = ssub.s32 1, %s4
  %s7 = scalar_select 0, %s6, %s4
  $region1: #{tpu_custom_call.1} parent=0
    #allocation3 [shape = 'u8[4096]{0}', space=vmem, size = 0x1000, scoped, tag = 'input window, operand 0, single buffered']
    #allocation4 [shape = 's32[1]{0}', space=sflag, size = 0x4, scoped, tag = 'scoped memory for tpu_custom_call.1']
    #allocation5 [shape = 's32[1]{0}', space=sflag, size = 0x4, scoped, tag = 'scoped memory for tpu_custom_call.1']
    #allocation6 [shape = 'u8[8192]{0}', space=vmem, size = 0x2000, scoped, tag = 'input window, operand 1, single buffered']
    #allocation7 [shape = 's32[1]{0}', space=sflag, size = 0x4, scoped, tag = 'scoped memory for tpu_custom_call.1']
    #allocation8 [shape = 'u8[8192]{0}', space=vmem, size = 0x2000, scoped, tag = 'output window, operand 0, single buffered']
    %8 = vsyncpa [#allocation4], 0
    %9 = vsyncpa [#allocation7], 0
    %10 = vsyncpa [#allocation5], 0
    // Predicated region
    $region2: #{tpu_custom_call.1} parent=1 // pred_check
      _
    $region3: #{tpu_custom_call.1} parent=1 // pred_check_branch
      %12 = sbr.rel (0) target = $region5
    $region4: #{tpu_custom_call.1} parent=1 // pred_region
      %s14 = ssub.s32 128, 128
      %15 = vsyncadd [#allocation4], %s14
      %s16 = sshll.u32 [#allocation3], 4
      %s17 = int_to_ptr.vmem [resolvable:$true] %s16
      %22 = dma.hbm_to_vmem [thread:$0]  %s0, 128, %s17, [#allocation4], 64, 64, 4
    $region5: #{tpu_custom_call.1} parent=1 // pred_fallthru
      _
    // Predicated region
    $region6: #{tpu_custom_call.1} parent=1 // pred_check
      _
    $region7: #{tpu_custom_call.1} parent=1 // pred_check_branch
      %24 = sbr.rel (0) target = $region9
    $region8: #{tpu_custom_call.1} parent=1 // pred_region
      %s26 = ssub.s32 256, 256
      %27 = vsyncadd [#allocation7], %s26
      %s28 = sshll.u32 [#allocation6], 4
      %s29 = int_to_ptr.vmem [resolvable:$true] %s28
      %34 = dma.hbm_to_vmem [thread:$0]  %s1, 256, %s29, [#allocation7], 64, 64, 4
    $region9: #{tpu_custom_call.1} parent=1 // pred_fallthru
      _
    // Predicated region
    $region10: #{tpu_custom_call.1} parent=1 // pred_check
      _
    $region11: #{tpu_custom_call.1} parent=1 // pred_check_branch
      %36 = sbr.rel (0) target = $region13
    $region12: #{tpu_custom_call.1} parent=1 // pred_region
      _
    $region13: #{tpu_custom_call.1} parent=1 // pred_fallthru
      _
    // Predicated region
    $region14: #{tpu_custom_call.1} parent=1 // pred_check
      _
    $region15: #{tpu_custom_call.1} parent=1 // pred_check_branch
      %38 = sbr.rel (0) target = $region17
    $region16: #{tpu_custom_call.1} parent=1 // pred_region
      %39 = dma.done [#allocation4], 128
    $region17: #{tpu_custom_call.1} parent=1 // pred_fallthru
      _
    // Predicated region
    $region18: #{tpu_custom_call.1} parent=1 // pred_check
      _
    $region19: #{tpu_custom_call.1} parent=1 // pred_check_branch
      %41 = sbr.rel (0) target = $region21
    $region20: #{tpu_custom_call.1} parent=1 // pred_region
      %42 = dma.done [#allocation7], 256
    $region21: #{tpu_custom_call.1} parent=1 // pred_fallthru
      _
    %p44 = scmp.eq.s32.totalorder 0, 0
    // Predicated region
    $region22: #{tpu_custom_call.1} parent=1 // pred_check
      %p45 = pneg %p44
    $region23: #{tpu_custom_call.1} parent=1 // pred_check_branch
      %47 = sbr.rel (%p45) target = $region25
    $region24: #{tpu_custom_call.1} parent=1 // pred_region
      %48 = vst [vmem:[#allocation2] sm:$0xff] 0.0
      %49 = vst [vmem:[#allocation2 + $0x8] sm:$0xff] 0.0
    $region25: #{tpu_custom_call.1} parent=1 // pred_fallthru
      _
    %v50 = vld [vmem:[#allocation2] sm:$0xff]
    %v51 = vld [vmem:[#allocation2 + $0x8] sm:$0xff]
    %v52 = vld [vmem:[#allocation3] sm:$0xf]
    %v53 = vld [vmem:[#allocation3 + $0x4] sm:$0xf]
    %v54 = vld [vmem:[#allocation6] sm:$0xf]
    %v55 = vld [vmem:[#allocation6 + $0x4] sm:$0xf]
    %v56 = vld [vmem:[#allocation6 + $0x8] sm:$0xf]
    %v57 = vld [vmem:[#allocation6 + $0xc] sm:$0xf]
    %v60 = vunpack.c.l.b16 %v52
    %v61 = vunpack.c.l.b16 %v53
    %v62 = vpack.c.b16 %v61, %v60
    %v67 = vunpack.c.l.b16 %v54
    %v68 = vunpack.c.l.b16 %v55
    %v69 = vunpack.c.l.b16 %v56
    %v70 = vunpack.c.l.b16 %v57
    %v71 = vpack.c.b16 %v68, %v67
    %v72 = vpack.c.b16 %v70, %v69
    %vm75 = vcmask 261120
    %v77 = vsel %vm75, %v62, 0
    %79 = vmatprep.subr.bf16.mxu0 0
    %80 = vmatpush1.bf16.msra.mxu0 %v71
    %81 = vmatprep.subr.bf16.mxu0 0
    %82 = vmatpush1.bf16.msra.mxu0 %v72
    %83 = vmatprep.subr.bf16.mxu0 0
    %84 = vmatpush1.bf16.msra.mxu0 0
    %85 = vmatprep.subr.bf16.mxu0 0
    %86 = vmatpush1.bf16.msra.mxu0 0
    %87 = vmatprep.subr.bf16.mxu0 0
    %88 = vmatpush1.bf16.msra.mxu0 0
    %89 = vmatprep.subr.bf16.mxu0 0
    %90 = vmatpush1.bf16.msra.mxu0 0
    %91 = vmatprep.subr.bf16.mxu0 0
    %92 = vmatpush1.bf16.msra.mxu0 0
    %93 = vmatprep.subr.bf16.mxu0 0
    %94 = vmatpush1.bf16.msra.mxu0 0
    %95 = vmatprep.subr.bf16.mxu0 0
    %96 = vmatpush1.bf16.msra.mxu0 0
    %97 = vmatprep.subr.bf16.mxu0 0
    %98 = vmatpush1.bf16.msra.mxu0 0
    %99 = vmatprep.subr.bf16.mxu0 0
    %100 = vmatpush1.bf16.msra.mxu0 0
    %101 = vmatprep.subr.bf16.mxu0 0
    %102 = vmatpush1.bf16.msra.mxu0 0
    %103 = vmatprep.subr.bf16.mxu0 0
    %104 = vmatpush1.bf16.msra.mxu0 0
    %105 = vmatprep.subr.bf16.mxu0 0
    %106 = vmatpush1.bf16.msra.mxu0 0
    %107 = vmatprep.subr.bf16.mxu0 0
    %108 = vmatpush1.bf16.msra.mxu0 0
    %109 = vmatprep.subr.bf16.mxu0 0
    %110 = vmatpush1.bf16.msra.mxu0 0
    %111 = vmatprep.mubr.bf16.mxu0 0
    %112 = vmatmul.mubr.bf16.gmra.mrb[0].mxu0 %v77
    %v113 = vpop.f32.mrb[0].mxu0
    %v114 = vadd.f32 0.0, %v113
    %v115 = vpop.f32.mrb[0].mxu0
    %v116 = vpop.f32.mrb[0].mxu0
    %v117 = vadd.f32 0.0, %v116
    %v118 = vpop.f32.mrb[0].mxu0
    %119 = vdwg.mxu0
    %v120 = vadd.f32 %v50, %v114
    %v121 = vadd.f32 %v51, %v117
    %122 = vst [vmem:[#allocation2] sm:$0xff] %v120
    %123 = vst [vmem:[#allocation2 + $0x8] sm:$0xff] %v121
    // Predicated region
    $region26: #{tpu_custom_call.1} parent=1 // pred_check
      %p124 = pneg %p44
    $region27: #{tpu_custom_call.1} parent=1 // pred_check_branch
      %126 = sbr.rel (%p124) target = $region29
    $region28: #{tpu_custom_call.1} parent=1 // pred_region
      %v127 = vld [vmem:[#allocation2] sm:$0xff]
      %v128 = vld [vmem:[#allocation2 + $0x8] sm:$0xff]
      %v129 = vld [vmem:[%s2] sm:$0x1]
      %v130 = vlaneseq
      %v131 = vshrl.u32 %v130, 7
      %v132 = vsub.s32 0, %v131
      %v133 = vrot.slane %v129, %v132
      %v134 = vadd.f32 %v127, %v133
      %v135 = vadd.f32 %v128, %v133
      %v136 = vlaneseq
      %v137 = vand.u32 %v136, 127
      %vm138 = vcmp.lt.s32.totalorder %v137, 64
      %v139 = vsel %vm138, %v134, 0.0
      %v140 = vsel %vm138, %v135, 0.0
      %141 = vadd.xlane.f32.xlu0 %v139
      %v142 = vpop.xlane.xlu0 %141
      %143 = vadd.xlane.f32.xlu0 %v140
      %v144 = vpop.xlane.xlu0 %143
      %v145 = vmul.f32 %v142, 0.015625
      %v146 = vmul.f32 %v144, 0.015625
      %v147 = vsub.f32 %v134, %v145
      %v148 = vsub.f32 %v135, %v146
      %v149 = vmul.f32 %v147, %v147
      %v150 = vmul.f32 %v148, %v148
      %v151 = vsel %vm138, %v149, 0.0
      %v152 = vsel %vm138, %v150, 0.0
      %153 = vadd.xlane.f32.xlu0 %v151
      %v154 = vpop.xlane.xlu0 %153
      %155 = vadd.xlane.f32.xlu0 %v152
      %v156 = vpop.xlane.xlu0 %155
      %v157 = vmul.f32 %v154, 0.015625
      %v158 = vmul.f32 %v156, 0.015625
      %v159 = vadd.f32 %v157, 1e-05
      %v160 = vadd.f32 %v158, 1e-05
      %v161 = vrsqrt.pop %v159
      %v162 = vrsqrt.pop %v160
      %v163 = vmul.f32 %v147, %v161
      %v164 = vmul.f32 %v148, %v162
      %v165 = vld [vmem:[%s2 + $0x1] sm:$0x1]
      %v166 = vlaneseq
      %v167 = vshrl.u32 %v166, 7
      %v168 = vsub.s32 0, %v167
      %v169 = vrot.slane %v165, %v168
      %v170 = vmul.f32 %v163, %v169
      %v171 = vmul.f32 %v164, %v169
      %v172 = vld [vmem:[%s2 + $0x2] sm:$0x1]
      %v173 = vlaneseq
      %v174 = vshrl.u32 %v173, 7
      %v175 = vsub.s32 0, %v174
      %v176 = vrot.slane %v172, %v175
      %v177 = vadd.f32 %v170, %v176
      %v178 = vadd.f32 %v171, %v176
      %vm179 = vcmp.ge.f32.partialorder %v177, 0.0
      %vm180 = vcmp.ge.f32.partialorder %v178, 0.0
      %v181 = vmul.f32 %v177, 0.2
      %v182 = vmul.f32 %v178, 0.2
      %v183 = vsel %vm179, %v177, %v181
      %v184 = vsel %vm180, %v178, %v182
      %185 = vst [vmem:[#allocation8] sm:$0xff] %v183
      %186 = vst [vmem:[#allocation8 + $0x8] sm:$0xff] %v184
    $region29: #{tpu_custom_call.1} parent=1 // pred_fallthru
      _
    // Predicated region
    $region30: #{tpu_custom_call.1} parent=1 // pred_check
      _
    $region31: #{tpu_custom_call.1} parent=1 // pred_check_branch
      %188 = sbr.rel (0) target = $region33
    $region32: #{tpu_custom_call.1} parent=1 // pred_region
      %s190 = ssub.s32 256, 256
      %191 = vsyncadd [#allocation5], %s190
      %s192 = sshll.u32 [#allocation8], 4
      %s193 = int_to_ptr.vmem [resolvable:$true] %s192
      %198 = dma.vmem_to_hbm [thread:$0]  %s193, 256, %s3, [#allocation5], 128, 128, 8
    $region33: #{tpu_custom_call.1} parent=1 // pred_fallthru
      _
    // Predicated region
    $region34: #{tpu_custom_call.1} parent=1 // pred_check
      _
    $region35: #{tpu_custom_call.1} parent=1 // pred_check_branch
      %200 = sbr.rel (0) target = $region37
    $region36: #{tpu_custom_call.1} parent=1 // pred_region
      %201 = dma.done [#allocation5], 256
    $region37: #{tpu_custom_call.1} parent=1 // pred_fallthru
      _
    %202 = vsyncpa [#allocation4], 1
    %203 = vsyncpa [#allocation7], 1
    %204 = vsyncpa [#allocation5], 1

</llo_original>
